<compile_context>
chip_gen: v5e
topology: v5e:2x2
jax: 0.10.0
libtpu: 0.0.40
codegen_flags: <defaults>
</compile_context>

<pallas_src>
import functools

import jax
import jax.numpy as jnp
from jax import lax
from jax.experimental import pallas as pl
from jax.experimental.pallas import tpu as pltpu


def _round_up(x, m):
    return ((x + m - 1) // m) * m


def _contrastive_kernel(prec_ref, label_ref, part_ref, *, margin, rows_total,
                        tile_rows, n_inner, need_row_mask):
    outer = pl.program_id(0)
    inner = pl.program_id(1)

    @pl.when(inner == 0)
    def _init():
        part_ref[...] = jnp.zeros_like(part_ref)

    lab = label_ref[...].astype(jnp.float32)   # {0., 1., 2.} exactly
    prec = prec_ref[...]

    is1 = (lab == 1.0).astype(jnp.float32)
    mask = jnp.where(lab == 2.0, 0.0, 1.0)     # == (label != 2); sum = count0+count1
    mp = mask * prec
    hinge = jnp.maximum(jnp.float32(margin) - mp, 0.0)

    s1 = (1.0 - lab) * (mp * mp)               # pos-term numerator
    s2 = lab * (hinge * hinge)                 # neg-term numerator

    if need_row_mask:
        # Padded rows carry label==2 and precision==0: they already contribute
        # zero to `mask`, `is1` and `s1`; only the hinge term must be masked.
        row0 = (outer * n_inner + inner) * tile_rows
        rows = lax.broadcasted_iota(jnp.int32, s2.shape, 0) + row0
        s2 = jnp.where(rows < rows_total, s2, 0.0)

    def fold(x):
        # (tile_rows, C) -> (8, C): pure VPU adds, no cross-lane (XLU) work.
        return x.reshape(tile_rows // 8, 8, x.shape[-1]).sum(axis=0)

    part_ref[0, 0] += fold(mask)   # -> num = count0 + count1
    part_ref[0, 1] += fold(is1)    # -> count1
    part_ref[0, 2] += fold(s1)     # -> sum (1-label)*(mask*p)^2
    part_ref[0, 3] += fold(s2)     # -> sum label*relu(margin - mask*p)^2


def contrastive_loss(precision, label, margin, *, target_tile_rows=512):
    """Pallas implementation of Contrastive_loss.forward(precision, label)."""
    R, C = precision.shape
    assert label.shape == (R, C)

    precision = precision.astype(jnp.float32)
    # {0,1,2} are exact in bf16 -> halves the label stream's HBM bytes.
    label = label.astype(jnp.bfloat16)

    # Tile rows: big enough to amortize per-grid-step overhead (~0.35 us),
    # small enough that double-buffered inputs stay well within scoped VMEM
    # on all of v5e / v6e / v7x. Multiple of 16 (bf16 sublane packing).
    vmem_budget_per_buf = 4 * 1024 * 1024                     # ~4 MiB f32 buf
    max_rows_by_vmem = max(16, (vmem_budget_per_buf // (4 * C)) // 16 * 16)
    tile_rows = min(target_tile_rows, max_rows_by_vmem, _round_up(R, 16))

    n_tiles = pl.cdiv(R, tile_rows)
    n_outer = 2 if n_tiles >= 2 else 1        # megacore split (parallel axis)
    n_inner = pl.cdiv(n_tiles, n_outer)
    rows_pad = n_outer * n_inner * tile_rows
    need_row_mask = rows_pad != R
    if need_row_mask:
        pad = rows_pad - R
        precision = jnp.pad(precision, ((0, pad), (0, 0)))
        label = jnp.pad(label, ((0, pad), (0, 0)), constant_values=2)

    kernel = functools.partial(
        _contrastive_kernel, margin=float(margin), rows_total=R,
        tile_rows=tile_rows, n_inner=n_inner, need_row_mask=need_row_mask)

    parts = pl.pallas_call(
        kernel,
        out_shape=jax.ShapeDtypeStruct((n_outer, 4, 8, C), jnp.float32),
        grid_spec=pltpu.PrefetchScalarGridSpec(
            num_scalar_prefetch=0,
            grid=(n_outer, n_inner),
            in_specs=[
                pl.BlockSpec((tile_rows, C), lambda o, i: (o * n_inner + i, 0)),
                pl.BlockSpec((tile_rows, C), lambda o, i: (o * n_inner + i, 0)),
            ],
            out_specs=pl.BlockSpec((1, 4, 8, C), lambda o, i: (o, 0, 0, 0)),
        ),
        compiler_params=pltpu.CompilerParams(
            dimension_semantics=("parallel", "arbitrary"),
            vmem_limit_bytes=32 * 1024 * 1024),
        cost_estimate=pl.CostEstimate(
            flops=10 * rows_pad * C,
            transcendentals=0,
            bytes_accessed=rows_pad * C * (4 + 2) + n_outer * 4 * 8 * C * 4),
    )(precision, label)

    # Tiny final combine in plain JAX (one cross-lane reduce of (n_outer,4,8,C)).
    sums = jnp.sum(parts, axis=(0, 2, 3))           # (4,)
    num, c1, s1, s2 = sums[0], sums[1], sums[2], sums[3]
    c0 = num - c1                                    # labels are in {0,1,2}
    pos = c1 / num
    neg = c0 / num
    return (pos * s1 + neg * s2) / jnp.float32(R * C)


def _reference_loss(precision, label, margin):
    # Plain-JAX mirror of the PyTorch forward, for verification.
    c0 = jnp.sum(label == 0)
    c1 = jnp.sum(label == 1)
    num = c0 + c1
    neg = c0 / num
    pos = c1 / num
    mask = jnp.where(label == 2, 0.0, 1.0)
    mp = mask * precision
    term = (pos * (1.0 - label) * mp * mp +
            neg * label * jnp.maximum(margin - mp, 0.0) ** 2)
    return jnp.mean(term)


if __name__ == "__main__":
    key = jax.random.PRNGKey(0)
    k_prec, k_lab = jax.random.split(key)

    margin = 1.0  # deterministic "parameter" from __init__(margin)

    # Small shapes: (ylen, xlen) = (16, 256); label values in {0, 1, 2}.
    R, C = 16, 256
    precision = jax.random.normal(k_prec, (R, C), dtype=jnp.float32)
    label = jax.random.randint(k_lab, (R, C), 0, 3).astype(jnp.float32)

    loss = contrastive_loss(precision, label, margin)
    loss = jax.block_until_ready(loss)
    expected = _reference_loss(precision, label, margin)
    assert jnp.allclose(loss, expected, rtol=1e-5, atol=1e-6), (loss, expected)

    # Ragged row count (exercises the padding / row-mask path).
    R2, C2 = 50, 256
    k_p2, k_l2 = jax.random.split(k_prec)
    precision2 = jax.random.normal(k_p2, (R2, C2), dtype=jnp.float32)
    label2 = jax.random.randint(k_l2, (R2, C2), 0, 3).astype(jnp.float32)
    loss2 = jax.block_until_ready(contrastive_loss(precision2, label2, margin))
    expected2 = _reference_loss(precision2, label2, margin)
    assert jnp.allclose(loss2, expected2, rtol=1e-5, atol=1e-6), (loss2, expected2)

    print("KERNEL_OK")
</pallas_src>

<mosaic_0001>
module attributes {stable_mosaic.version = 11 : i64} {
  func.func @_contrastive_kernel(%arg0: i32, %arg1: i32, %arg2: memref<16x256xf32, #tpu.memory_space<vmem>>, %arg3: memref<16x256xbf16, #tpu.memory_space<vmem>>, %arg4: memref<1x4x8x256xf32, #tpu.memory_space<vmem>>) attributes {dimension_semantics = [#tpu.dimension_semantics<parallel>, #tpu.dimension_semantics<arbitrary>], iteration_bounds = array<i64: 1, 1>, scalar_prefetch = 0 : i64, scratch_operands = 0 : i64, tpu.core_type = #tpu.core_type<tc>, window_params = [{transform_indices = @transform_0, window_bounds = array<i64: 16, 256>}, {transform_indices = @transform_1, window_bounds = array<i64: 16, 256>}, {transform_indices = @transform_2, window_bounds = array<i64: 1, 4, 8, 256>}]} {
    %c0_i32 = arith.constant 0 : i32
    %0 = arith.cmpi eq, %arg1, %c0_i32 : i32
    %1 = arith.extui %0 : i1 to i32
    %c0_i32_0 = arith.constant 0 : i32
    %2 = arith.cmpi ne, %1, %c0_i32_0 : i32
    scf.if %2 {
      %cst_43 = arith.constant 0.000000e+00 : f32
      %58 = vector.broadcast %cst_43 : f32 to vector<1x4x8x256xf32>
      %c0_44 = arith.constant 0 : index
      %c0_45 = arith.constant 0 : index
      %c0_46 = arith.constant 0 : index
      %c0_47 = arith.constant 0 : index
      %59 = vector.load %arg4[%c0_44, %c0_45, %c0_46, %c0_47] : memref<1x4x8x256xf32, #tpu.memory_space<vmem>>, vector<1x4x8x256xf32>
      tpu.vector_store %arg4[%c0_44, %c0_45, %c0_46, %c0_47], %58 {strides = array<i32>} : memref<1x4x8x256xf32, #tpu.memory_space<vmem>>, vector<1x4x8x256xf32>,
    } else {
    }
    %c0 = arith.constant 0 : index
    %c0_1 = arith.constant 0 : index
    %3 = vector.load %arg3[%c0, %c0_1] : memref<16x256xbf16, #tpu.memory_space<vmem>>, vector<16x256xbf16>
    %4 = arith.extf %3 : vector<16x256xbf16> to vector<16x256xf32>
    %c0_2 = arith.constant 0 : index
    %c0_3 = arith.constant 0 : index
    %5 = vector.load %arg2[%c0_2, %c0_3] : memref<16x256xf32, #tpu.memory_space<vmem>>, vector<16x256xf32>
    %cst = arith.constant 1.000000e+00 : f32
    %6 = vector.broadcast %cst : f32 to vector<16x256xf32>
    %7 = arith.cmpf oeq, %4, %6 : vector<16x256xf32>
    %8 = arith.extui %7 : vector<16x256xi1> to vector<16x256xi32>
    %9 = arith.sitofp %8 : vector<16x256xi32> to vector<16x256xf32>
    %cst_4 = arith.constant 2.000000e+00 : f32
    %10 = vector.broadcast %cst_4 : f32 to vector<16x256xf32>
    %11 = arith.cmpf oeq, %4, %10 : vector<16x256xf32>
    %cst_5 = arith.constant 0.000000e+00 : f32
    %cst_6 = arith.constant 1.000000e+00 : f32
    %12 = vector.broadcast %cst_5 : f32 to vector<16x256xf32>
    %13 = vector.broadcast %cst_6 : f32 to vector<16x256xf32>
    %14 = arith.select %11, %12, %13 : vector<16x256xi1>, vector<16x256xf32>
    %15 = arith.mulf %14, %5 : vector<16x256xf32>
    %cst_7 = arith.constant 1.000000e+00 : f32
    %16 = vector.broadcast %cst_7 : f32 to vector<16x256xf32>
    %17 = arith.subf %16, %15 : vector<16x256xf32>
    %cst_8 = arith.constant 0.000000e+00 : f32
    %18 = vector.broadcast %cst_8 : f32 to vector<16x256xf32>
    %19 = arith.maximumf %17, %18 : vector<16x256xf32>
    %cst_9 = arith.constant 1.000000e+00 : f32
    %20 = vector.broadcast %cst_9 : f32 to vector<16x256xf32>
    %21 = arith.subf %20, %4 : vector<16x256xf32>
    %22 = arith.mulf %15, %15 : vector<16x256xf32>
    %23 = arith.mulf %21, %22 : vector<16x256xf32>
    %24 = arith.mulf %19, %19 : vector<16x256xf32>
    %25 = arith.mulf %4, %24 : vector<16x256xf32>
    %c0_10 = arith.constant 0 : index
    %c0_11 = arith.constant 0 : index
    %c0_12 = arith.constant 0 : index
    %c0_13 = arith.constant 0 : index
    %26 = vector.load %arg4[%c0_10, %c0_11, %c0_12, %c0_13] : memref<1x4x8x256xf32, #tpu.memory_space<vmem>>, vector<1x1x8x256xf32>
    %27 = vector.shape_cast %26 : vector<1x1x8x256xf32> to vector<8x256xf32>
    %28 = vector.shape_cast %14 : vector<16x256xf32> to vector<2x8x256xf32>
    %cst_14 = arith.constant dense<0.000000e+00> : vector<8x256xf32>
    %29 = vector.multi_reduction <add>, %28, %cst_14 [0] : vector<2x8x256xf32> to vector<8x256xf32>
    %30 = arith.addf %27, %29 : vector<8x256xf32>
    %c0_15 = arith.constant 0 : index
    %c0_16 = arith.constant 0 : index
    %c0_17 = arith.constant 0 : index
    %c0_18 = arith.constant 0 : index
    %31 = vector.load %arg4[%c0_15, %c0_16, %c0_17, %c0_18] : memref<1x4x8x256xf32, #tpu.memory_space<vmem>>, vector<1x1x8x256xf32>
    %32 = vector.shape_cast %31 : vector<1x1x8x256xf32> to vector<8x256xf32>
    %33 = vector.shape_cast %30 : vector<8x256xf32> to vector<1x1x8x256xf32>
    tpu.vector_store %arg4[%c0_15, %c0_16, %c0_17, %c0_18], %33 {strides = array<i32>} : memref<1x4x8x256xf32, #tpu.memory_space<vmem>>, vector<1x1x8x256xf32>,
    %c0_19 = arith.constant 0 : index
    %c1 = arith.constant 1 : index
    %c0_20 = arith.constant 0 : index
    %c0_21 = arith.constant 0 : index
    %34 = vector.load %arg4[%c0_19, %c1, %c0_20, %c0_21] : memref<1x4x8x256xf32, #tpu.memory_space<vmem>>, vector<1x1x8x256xf32>
    %35 = vector.shape_cast %34 : vector<1x1x8x256xf32> to vector<8x256xf32>
    %36 = vector.shape_cast %9 : vector<16x256xf32> to vector<2x8x256xf32>
    %cst_22 = arith.constant dense<0.000000e+00> : vector<8x256xf32>
    %37 = vector.multi_reduction <add>, %36, %cst_22 [0] : vector<2x8x256xf32> to vector<8x256xf32>
    %38 = arith.addf %35, %37 : vector<8x256xf32>
    %c0_23 = arith.constant 0 : index
    %c1_24 = arith.constant 1 : index
    %c0_25 = arith.constant 0 : index
    %c0_26 = arith.constant 0 : index
    %39 = vector.load %arg4[%c0_23, %c1_24, %c0_25, %c0_26] : memref<1x4x8x256xf32, #tpu.memory_space<vmem>>, vector<1x1x8x256xf32>
    %40 = vector.shape_cast %39 : vector<1x1x8x256xf32> to vector<8x256xf32>
    %41 = vector.shape_cast %38 : vector<8x256xf32> to vector<1x1x8x256xf32>
    tpu.vector_store %arg4[%c0_23, %c1_24, %c0_25, %c0_26], %41 {strides = array<i32>} : memref<1x4x8x256xf32, #tpu.memory_space<vmem>>, vector<1x1x8x256xf32>,
    %c0_27 = arith.constant 0 : index
    %c2 = arith.constant 2 : index
    %c0_28 = arith.constant 0 : index
    %c0_29 = arith.constant 0 : index
    %42 = vector.load %arg4[%c0_27, %c2, %c0_28, %c0_29] : memref<1x4x8x256xf32, #tpu.memory_space<vmem>>, vector<1x1x8x256xf32>
    %43 = vector.shape_cast %42 : vector<1x1x8x256xf32> to vector<8x256xf32>
    %44 = vector.shape_cast %23 : vector<16x256xf32> to vector<2x8x256xf32>
    %cst_30 = arith.constant dense<0.000000e+00> : vector<8x256xf32>
    %45 = vector.multi_reduction <add>, %44, %cst_30 [0] : vector<2x8x256xf32> to vector<8x256xf32>
    %46 = arith.addf %43, %45 : vector<8x256xf32>
    %c0_31 = arith.constant 0 : index
    %c2_32 = arith.constant 2 : index
    %c0_33 = arith.constant 0 : index
    %c0_34 = arith.constant 0 : index
    %47 = vector.load %arg4[%c0_31, %c2_32, %c0_33, %c0_34] : memref<1x4x8x256xf32, #tpu.memory_space<vmem>>, vector<1x1x8x256xf32>
    %48 = vector.shape_cast %47 : vector<1x1x8x256xf32> to vector<8x256xf32>
    %49 = vector.shape_cast %46 : vector<8x256xf32> to vector<1x1x8x256xf32>
    tpu.vector_store %arg4[%c0_31, %c2_32, %c0_33, %c0_34], %49 {strides = array<i32>} : memref<1x4x8x256xf32, #tpu.memory_space<vmem>>, vector<1x1x8x256xf32>,
    %c0_35 = arith.constant 0 : index
    %c3 = arith.constant 3 : index
    %c0_36 = arith.constant 0 : index
    %c0_37 = arith.constant 0 : index
    %50 = vector.load %arg4[%c0_35, %c3, %c0_36, %c0_37] : memref<1x4x8x256xf32, #tpu.memory_space<vmem>>, vector<1x1x8x256xf32>
    %51 = vector.shape_cast %50 : vector<1x1x8x256xf32> to vector<8x256xf32>
    %52 = vector.shape_cast %25 : vector<16x256xf32> to vector<2x8x256xf32>
    %cst_38 = arith.constant dense<0.000000e+00> : vector<8x256xf32>
    %53 = vector.multi_reduction <add>, %52, %cst_38 [0] : vector<2x8x256xf32> to vector<8x256xf32>
    %54 = arith.addf %51, %53 : vector<8x256xf32>
    %c0_39 = arith.constant 0 : index
    %c3_40 = arith.constant 3 : index
    %c0_41 = arith.constant 0 : index
    %c0_42 = arith.constant 0 : index
    %55 = vector.load %arg4[%c0_39, %c3_40, %c0_41, %c0_42] : memref<1x4x8x256xf32, #tpu.memory_space<vmem>>, vector<1x1x8x256xf32>
    %56 = vector.shape_cast %55 : vector<1x1x8x256xf32> to vector<8x256xf32>
    %57 = vector.shape_cast %54 : vector<8x256xf32> to vector<1x1x8x256xf32>
    tpu.vector_store %arg4[%c0_39, %c3_40, %c0_41, %c0_42], %57 {strides = array<i32>} : memref<1x4x8x256xf32, #tpu.memory_space<vmem>>, vector<1x1x8x256xf32>,
    return
  }
  func.func @transform_0(%arg0: i32, %arg1: i32) -> (i32, i32) {
    %c1_i32 = arith.constant 1 : i32
    %0 = arith.muli %arg0, %c1_i32 : i32
    %1 = arith.addi %0, %arg1 : i32
    %c0_i32 = arith.constant 0 : i32
    %c0_i32_0 = arith.constant 0 : i32
    return %1, %c0_i32 : i32, i32
  }
  func.func @transform_1(%arg0: i32, %arg1: i32) -> (i32, i32) {
    %c1_i32 = arith.constant 1 : i32
    %0 = arith.muli %arg0, %c1_i32 : i32
    %1 = arith.addi %0, %arg1 : i32
    %c0_i32 = arith.constant 0 : i32
    %c0_i32_0 = arith.constant 0 : i32
    return %1, %c0_i32 : i32, i32
  }
  func.func @transform_2(%arg0: i32, %arg1: i32) -> (i32, i32, i32, i32) {
    %c0_i32 = arith.constant 0 : i32
    %c0_i32_0 = arith.constant 0 : i32
    %c0_i32_1 = arith.constant 0 : i32
    %c0_i32_2 = arith.constant 0 : i32
    return %arg0, %c0_i32, %c0_i32_0, %c0_i32_1 : i32, i32, i32, i32
  }
}

</mosaic_0001>

<llo_original>
// kernel: tpu_custom_call.1
$region0: #{tpu_custom_call.1}
  #allocation0 [shape = 'u32[]', space=smem, size = 0x4, offset = 0x4, fixed_abs, tag = 'smem constant byte address 0x4 - core index']
  #allocation1 [shape = 'u32[72,128]{1,0:T(1,128)}', space=vmem, size = 0x9000, scoped, tag = 'internal scratch']
  %s0 = inlined_call_operand.hbm [shape: f32[16,256], index: 0, kind: input, shape index: {}]
  %s1 = inlined_call_operand.hbm [shape: bf16[16,256], index: 1, kind: input, shape index: {}]
  %s2 = inlined_call_operand.hbm [shape: f32[1,4,8,256], index: 2, kind: output, shape index: {}]
  %s3 = sld [smem:[#allocation0]]
  $region30: #{tpu_custom_call.1} parent=0
    _
  %s5 = ssub.s32 1, %s3
  %s6 = scalar_select 0, %s5, %s3
  $region1: #{tpu_custom_call.1} parent=0
    #allocation2 [shape = 'u8[16384]{0}', space=vmem, size = 0x4000, scoped, tag = 'input window, operand 0, single buffered']
    #allocation3 [shape = 's32[1]{0}', space=sflag, size = 0x4, scoped, tag = 'scoped memory for tpu_custom_call.1']
    #allocation4 [shape = 's32[1]{0}', space=sflag, size = 0x4, scoped, tag = 'scoped memory for tpu_custom_call.1']
    #allocation5 [shape = 'u8[8192]{0}', space=vmem, size = 0x2000, scoped, tag = 'input window, operand 1, single buffered']
    #allocation6 [shape = 's32[1]{0}', space=sflag, size = 0x4, scoped, tag = 'scoped memory for tpu_custom_call.1']
    #allocation7 [shape = 'u8[32768]{0}', space=vmem, size = 0x8000, scoped, tag = 'output window, operand 0, single buffered']
    %7 = vsyncpa [#allocation3], 0
    %8 = vsyncpa [#allocation6], 0
    %9 = vsyncpa [#allocation4], 0
    // Predicated region
    $region2: #{tpu_custom_call.1} parent=1 // pred_check
      _
    $region3: #{tpu_custom_call.1} parent=1 // pred_check_branch
      %11 = sbr.rel (0) target = $region5
    $region4: #{tpu_custom_call.1} parent=1 // pred_region
      %s12 = sadd.s32 0, 0
      %s13 = smul.u32 2, %s12
      %15 = vsyncadd [#allocation3], 0
      %s16 = smul.addr %s13, 2
      %s17 = smul.addr %s16, 8
      %s18 = scalar_lea.hbm %s0, %s17
      %s19 = sshll.u32 %s18, 4
      %s20 = int_to_ptr.hbm [resolvable:$true] %s19
      %s21 = sshll.u32 [#allocation2], 4
      %s22 = int_to_ptr.vmem [resolvable:$true] %s21
      %27 = dma.hbm_to_vmem [thread:$0]  %s20, 512, %s22, [#allocation3], 256, 256, 16
    $region5: #{tpu_custom_call.1} parent=1 // pred_fallthru
      _
    // Predicated region
    $region6: #{tpu_custom_call.1} parent=1 // pred_check
      _
    $region7: #{tpu_custom_call.1} parent=1 // pred_check_branch
      %29 = sbr.rel (0) target = $region9
    $region8: #{tpu_custom_call.1} parent=1 // pred_region
      %s30 = sadd.s32 0, 0
      %s31 = smul.u32 2, %s30
      %33 = vsyncadd [#allocation6], 0
      %s34 = smul.addr %s31, 2
      %s35 = smul.addr %s34, 4
      %s36 = scalar_lea.hbm %s1, %s35
      %s37 = sshll.u32 %s36, 4
      %s38 = int_to_ptr.hbm [resolvable:$true] %s37
      %s39 = sshll.u32 [#allocation5], 4
      %s40 = int_to_ptr.vmem [resolvable:$true] %s39
      %45 = dma.hbm_to_vmem [thread:$0]  %s38, 256, %s40, [#allocation6], 128, 128, 8
    $region9: #{tpu_custom_call.1} parent=1 // pred_fallthru
      _
    // Predicated region
    $region10: #{tpu_custom_call.1} parent=1 // pred_check
      _
    $region11: #{tpu_custom_call.1} parent=1 // pred_check_branch
      %47 = sbr.rel (0) target = $region13
    $region12: #{tpu_custom_call.1} parent=1 // pred_region
      %49 = dma.done [#allocation3], 512
    $region13: #{tpu_custom_call.1} parent=1 // pred_fallthru
      _
    // Predicated region
    $region14: #{tpu_custom_call.1} parent=1 // pred_check
      _
    $region15: #{tpu_custom_call.1} parent=1 // pred_check_branch
      %51 = sbr.rel (0) target = $region17
    $region16: #{tpu_custom_call.1} parent=1 // pred_region
      %53 = dma.done [#allocation6], 256
    $region17: #{tpu_custom_call.1} parent=1 // pred_fallthru
      _
    %s54 = sadd.s32 0, 0
    %s55 = smul.u32 2, %s54
    %s56 = sadd.s32 0, 0
    %s57 = smul.u32 2, %s56
    %p58 = scmp.eq.s32.totalorder 0, 0
    // Predicated region
    $region18: #{tpu_custom_call.1} parent=1 // pred_check
      %p59 = pneg %p58
    $region19: #{tpu_custom_call.1} parent=1 // pred_check_branch
      %61 = sbr.rel (%p59) target = $region21
    $region20: #{tpu_custom_call.1} parent=1 // pred_region
      %62 = vst [vmem:[#allocation7] sm:$0xff] 0.0
      %63 = vst [vmem:[#allocation7 + $0x8] sm:$0xff] 0.0
      %64 = vst [vmem:[#allocation7 + $0x10] sm:$0xff] 0.0
      %65 = vst [vmem:[#allocation7 + $0x18] sm:$0xff] 0.0
      %66 = vst [vmem:[#allocation7 + $0x20] sm:$0xff] 0.0
      %67 = vst [vmem:[#allocation7 + $0x28] sm:$0xff] 0.0
      %68 = vst [vmem:[#allocation7 + $0x30] sm:$0xff] 0.0
      %69 = vst [vmem:[#allocation7 + $0x38] sm:$0xff] 0.0
    $region21: #{tpu_custom_call.1} parent=1 // pred_fallthru
      _
    %v70 = vld [vmem:[#allocation5] sm:$0xff]
    %v71 = vld [vmem:[#allocation5 + $0x8] sm:$0xff]
    %v72 = vunpack.c.l.bf16 %v70
    %v73 = vunpack.c.h.bf16 %v70
    %v74 = vunpack.c.l.bf16 %v71
    %v75 = vunpack.c.h.bf16 %v71
    %v76 = vld [vmem:[#allocation2] sm:$0xff]
    %v77 = vld [vmem:[#allocation2 + $0x8] sm:$0xff]
    %v78 = vld [vmem:[#allocation2 + $0x10] sm:$0xff]
    %v79 = vld [vmem:[#allocation2 + $0x18] sm:$0xff]
    %vm80 = vcmp.eq.f32.partialorder %v72, 1.0
    %vm81 = vcmp.eq.f32.partialorder %v73, 1.0
    %vm82 = vcmp.eq.f32.partialorder %v74, 1.0
    %vm83 = vcmp.eq.f32.partialorder %v75, 1.0
    %v84 = vsel %vm80, 1, 0
    %v85 = vsel %vm81, 1, 0
    %v86 = vsel %vm82, 1, 0
    %v87 = vsel %vm83, 1, 0
    %v88 = vcvt.s32.f32 %v84
    %v89 = vcvt.s32.f32 %v85
    %v90 = vcvt.s32.f32 %v86
    %v91 = vcvt.s32.f32 %v87
    %vm92 = vcmp.eq.f32.partialorder %v72, 2.0
    %vm93 = vcmp.eq.f32.partialorder %v73, 2.0
    %vm94 = vcmp.eq.f32.partialorder %v74, 2.0
    %vm95 = vcmp.eq.f32.partialorder %v75, 2.0
    %v96 = vsel %vm92, 0.0, 1.0
    %v97 = vsel %vm93, 0.0, 1.0
    %v98 = vsel %vm94, 0.0, 1.0
    %v99 = vsel %vm95, 0.0, 1.0
    %v100 = vmul.f32 %v96, %v76
    %v101 = vmul.f32 %v97, %v77
    %v102 = vmul.f32 %v98, %v78
    %v103 = vmul.f32 %v99, %v79
    %v104 = vsub.f32 1.0, %v100
    %v105 = vsub.f32 1.0, %v101
    %v106 = vsub.f32 1.0, %v102
    %v107 = vsub.f32 1.0, %v103
    %v108 = vmax.f32 %v104, 0.0
    %v109 = vmax.f32 %v105, 0.0
    %v110 = vmax.f32 %v106, 0.0
    %v111 = vmax.f32 %v107, 0.0
    %v112 = vsub.f32 1.0, %v72
    %v113 = vsub.f32 1.0, %v73
    %v114 = vsub.f32 1.0, %v74
    %v115 = vsub.f32 1.0, %v75
    %v116 = vmul.f32 %v100, %v100
    %v117 = vmul.f32 %v101, %v101
    %v118 = vmul.f32 %v102, %v102
    %v119 = vmul.f32 %v103, %v103
    %v120 = vmul.f32 %v112, %v116
    %v121 = vmul.f32 %v113, %v117
    %v122 = vmul.f32 %v114, %v118
    %v123 = vmul.f32 %v115, %v119
    %v124 = vmul.f32 %v108, %v108
    %v125 = vmul.f32 %v109, %v109
    %v126 = vmul.f32 %v110, %v110
    %v127 = vmul.f32 %v111, %v111
    %v128 = vmul.f32 %v72, %v124
    %v129 = vmul.f32 %v73, %v125
    %v130 = vmul.f32 %v74, %v126
    %v131 = vmul.f32 %v75, %v127
    %v132 = vld [vmem:[#allocation7] sm:$0xff]
    %v133 = vld [vmem:[#allocation7 + $0x8] sm:$0xff]
    %v134 = vadd.f32 %v96, %v98
    %v135 = vadd.f32 %v97, %v99
    %v136 = vadd.f32 %v132, %v134
    %v137 = vadd.f32 %v133, %v135
    %138 = vst [vmem:[#allocation7] sm:$0xff] %v136
    %139 = vst [vmem:[#allocation7 + $0x8] sm:$0xff] %v137
    %s140 = scalar_lea.vmem [#allocation7], 16
    %v141 = vld [vmem:[%s140] sm:$0xff]
    %v142 = vld [vmem:[%s140 + $0x8] sm:$0xff]
    %v143 = vadd.f32 %v88, %v90
    %v144 = vadd.f32 %v89, %v91
    %v145 = vadd.f32 %v141, %v143
    %v146 = vadd.f32 %v142, %v144
    %147 = vst [vmem:[%s140] sm:$0xff] %v145
    %148 = vst [vmem:[%s140 + $0x8] sm:$0xff] %v146
    %s149 = scalar_lea.vmem [#allocation7], 32
    %v150 = vld [vmem:[%s149] sm:$0xff]
    %v151 = vld [vmem:[%s149 + $0x8] sm:$0xff]
    %v152 = vadd.f32 %v120, %v122
    %v153 = vadd.f32 %v121, %v123
    %v154 = vadd.f32 %v150, %v152
    %v155 = vadd.f32 %v151, %v153
    %156 = vst [vmem:[%s149] sm:$0xff] %v154
    %157 = vst [vmem:[%s149 + $0x8] sm:$0xff] %v155
    %s158 = scalar_lea.vmem [#allocation7], 48
    %v159 = vld [vmem:[%s158] sm:$0xff]
    %v160 = vld [vmem:[%s158 + $0x8] sm:$0xff]
    %v161 = vadd.f32 %v128, %v130
    %v162 = vadd.f32 %v129, %v131
    %v163 = vadd.f32 %v159, %v161
    %v164 = vadd.f32 %v160, %v162
    %165 = vst [vmem:[%s158] sm:$0xff] %v163
    %166 = vst [vmem:[%s158 + $0x8] sm:$0xff] %v164
    // Predicated region
    $region22: #{tpu_custom_call.1} parent=1 // pred_check
      _
    $region23: #{tpu_custom_call.1} parent=1 // pred_check_branch
      %168 = sbr.rel (0) target = $region25
    $region24: #{tpu_custom_call.1} parent=1 // pred_region
      %170 = vsyncadd [#allocation4], 0
      %s171 = sshll.u32 [#allocation7], 4
      %s172 = int_to_ptr.vmem [resolvable:$true] %s171
      %s173 = sshll.u32 %s2, 4
      %s174 = int_to_ptr.hbm [resolvable:$true] %s173
      %179 = dma.vmem_to_hbm [thread:$0]  %s172, 1024, %s174, [#allocation4], 256, 256, 16
    $region25: #{tpu_custom_call.1} parent=1 // pred_fallthru
      _
    // Predicated region
    $region26: #{tpu_custom_call.1} parent=1 // pred_check
      _
    $region27: #{tpu_custom_call.1} parent=1 // pred_check_branch
      %181 = sbr.rel (0) target = $region29
    $region28: #{tpu_custom_call.1} parent=1 // pred_region
      %183 = dma.done [#allocation4], 1024
    $region29: #{tpu_custom_call.1} parent=1 // pred_fallthru
      _
    %184 = vsyncpa [#allocation3], 1
    %185 = vsyncpa [#allocation6], 1
    %186 = vsyncpa [#allocation4], 1

</llo_original>
